<compile_context>
chip_gen: v5e
topology: v5e:2x2
jax: 0.10.0
libtpu: 0.0.40
codegen_flags: <defaults>
</compile_context>

<pallas_src>
import functools

import jax
import jax.numpy as jnp
from jax.experimental import pallas as pl
from jax.experimental.pallas import tpu as pltpu

_NEG_BIG = -1e30  # finite f32 sentinel for masked max


def _round_up(v, m):
    return ((v + m - 1) // m) * m


# -------------------- fused Pallas kernel --------------------

def _fused_kernel(gid_ref, x_ref, *rest, num_layers, num_graphs, num_classes):
    # rest = (w0, b0, w1, b1, ..., out_ref, gmp_acc, gap_acc)
    wb_refs = rest[:2 * num_layers]
    out_ref = rest[2 * num_layers]
    gmp_acc, gap_acc = rest[2 * num_layers + 1:]

    t = pl.program_id(0)
    nt = pl.num_programs(0)
    b_pad, c_pad = gmp_acc.shape

    @pl.when(t == 0)
    def _init():
        gmp_acc[...] = jnp.full_like(gmp_acc, _NEG_BIG)
        gap_acc[...] = jnp.zeros_like(gap_acc)

    # ---- fused ChebConv(K=1) stack: activations stay in VMEM / vregs ----
    h = x_ref[...]                                     # [tile_n, f_pad] f32
    for l in range(num_layers):
        w_ref = wb_refs[2 * l]
        b_ref = wb_refs[2 * l + 1]
        # layer 0: f32 x f32 (K = round_up(F,8), one native sublane tile)
        # layers 1+: bf16 x bf16 inputs, f32 accumulate (2-3x MXU throughput)
        lhs = h if l == 0 else h.astype(jnp.bfloat16)
        h = jnp.dot(lhs, w_ref[...], preferred_element_type=jnp.float32) + b_ref[...]
        if l < num_layers - 1:
            h = h * jax.nn.sigmoid(h)                  # SiLU in f32 (VPU/EUP)

    tile_n = h.shape[0]
    # gid: [tile_n, 1] int32; padded nodes carry id == num_graphs.
    gid = gid_ref[...]

    # ---- mean-pool numerator + node counts: ONE one-hot MXU matmul per tile ----
    onehot = (gid == jax.lax.broadcasted_iota(jnp.int32, (tile_n, b_pad), 1)
              ).astype(jnp.float32)                    # [tile_n, b_pad]
    # spare last lane (c_pad-1, guaranteed >= num_classes) carries a 1 per node,
    # so gap_acc[:, c_pad-1] accumulates the per-graph node count for free.
    lane = jax.lax.broadcasted_iota(jnp.int32, h.shape, 1)
    h_aug = jnp.where(lane == c_pad - 1, 1.0, h)
    gap_partial = jax.lax.dot_general(
        onehot, h_aug, dimension_numbers=(((0,), (0,)), ((), ())),
        preferred_element_type=jnp.float32)            # [b_pad, c_pad]
    gap_acc[...] += gap_partial

    # ---- max pool: per-graph masked max, merged locally, ONE full-block store ----
    row = jax.lax.broadcasted_iota(jnp.int32, (b_pad, c_pad), 0)
    tile_max = jnp.full((b_pad, c_pad), _NEG_BIG, jnp.float32)
    for b in range(num_graphs):                        # static unroll (num_graphs small/static)
        mx_b = jnp.max(jnp.where(gid == b, h, _NEG_BIG), axis=0, keepdims=True)  # [1, c_pad]
        tile_max = jnp.where(row == b, mx_b, tile_max)
    gmp_acc[...] = jnp.maximum(gmp_acc[...], tile_max)

    # ---- finalize: mean pool (exact divide), joint log_softmax, single write ----
    @pl.when(t == nt - 1)
    def _finalize():
        gmp = gmp_acc[...]
        gsum = gap_acc[...]
        cnt = jnp.maximum(gsum[:, c_pad - 1:c_pad], 1.0)   # [b_pad, 1]; guard empty graphs
        gap = gsum / cnt                                    # exact divide (runs once)

        col = jax.lax.broadcasted_iota(jnp.int32, (b_pad, c_pad), 1)
        valid = col < num_classes                           # ignore lane padding in softmax
        gmp_v = jnp.where(valid, gmp, _NEG_BIG)
        gap_v = jnp.where(valid, gap, _NEG_BIG)

        m = jnp.maximum(jnp.max(gmp_v, axis=1, keepdims=True),
                        jnp.max(gap_v, axis=1, keepdims=True))
        denom = (jnp.sum(jnp.exp(gmp_v - m), axis=1, keepdims=True)
                 + jnp.sum(jnp.exp(gap_v - m), axis=1, keepdims=True))
        log_denom = jnp.log(denom)

        # lane-dense (multiple-of-128) stores; real classes sit in the first lanes
        out_ref[:, :c_pad] = (gmp_v - m - log_denom).astype(out_ref.dtype)
        out_ref[:, c_pad:] = (gap_v - m - log_denom).astype(out_ref.dtype)


# -------------------- parameter init (deterministic, in-script) --------------------

def init_params(key, num_features, width, num_classes):
    dims = [num_features] + list(width) + [num_classes]
    params = []
    for i in range(len(dims) - 1):
        key, sub = jax.random.split(key)
        fan_in, fan_out = dims[i], dims[i + 1]
        bound = jnp.sqrt(6.0 / (fan_in + fan_out))      # xavier_uniform_
        w = jax.random.uniform(sub, (fan_in, fan_out), jnp.float32, -bound, bound)
        b = jnp.zeros((fan_out,), jnp.float32)
        params.append((w, b))
    return params


# -------------------- forward pass (single fused pallas_call) --------------------

def cheb_conv_net_forward(x, edge_index, batch, num_graphs, params, *, tile_nodes=2048):
    del edge_index  # K=1 ChebConv does not propagate over edges

    n, f = x.shape
    num_classes = params[-1][0].shape[1]
    num_layers = len(params)

    # Tile size: 2048 nodes -> ~3-4 MiB live VMEM (x tile 2x64 KiB + f32/bf16 intermediates),
    # comfortably under v5e's 16 MiB scoped default and v6e/v7x's 32 MiB; sweep up to 8192
    # (raise CompilerParams(vmem_limit_bytes=...) first on v5e).
    tm = min(tile_nodes, _round_up(n, 8))
    n_pad = _round_up(n, tm)
    f_pad = _round_up(f, 8)                       # only pad features to the sublane tile
    c_pad = _round_up(num_classes + 1, 128)       # +1 spare lane carries node counts
    b_pad = _round_up(max(num_graphs, 1), 8)

    x_p = jnp.zeros((n_pad, f_pad), jnp.float32).at[:n, :f].set(x.astype(jnp.float32))
    gid = jnp.full((n_pad, 1), num_graphs, jnp.int32).at[:n, 0].set(batch.astype(jnp.int32))

    flat_wb = []
    wb_specs = []
    flops = 0
    for li, (w, b) in enumerate(params):
        fin, fout = w.shape
        fi_p = f_pad if li == 0 else _round_up(fin, 128)
        fo_p = c_pad if li == num_layers - 1 else _round_up(fout, 128)
        wdt = jnp.float32 if li == 0 else jnp.bfloat16   # bf16 MXU inputs for 128-K layers
        w_p = jnp.zeros((fi_p, fo_p), jnp.float32).at[:fin, :fout].set(w).astype(wdt)
        b_p = jnp.zeros((1, fo_p), jnp.float32).at[0, :fout].set(b)
        flat_wb += [w_p, b_p]
        # grid-invariant full blocks -> weights/biases stay resident in VMEM
        wb_specs += [pl.BlockSpec((fi_p, fo_p), lambda i: (0, 0)),
                     pl.BlockSpec((1, fo_p), lambda i: (0, 0))]
        flops += 2 * n_pad * fi_p * fo_p
    flops += 2 * n_pad * b_pad * c_pad            # one-hot pooling matmul
    transcendentals = n_pad * 128 * max(num_layers - 1, 0)
    bytes_accessed = (x_p.size * 4 + gid.size * 4
                      + sum(int(a.size) * a.dtype.itemsize for a in flat_wb)
                      + b_pad * 2 * c_pad * 4)

    grid = (n_pad // tm,)
    in_specs = [pl.BlockSpec((tm, 1), lambda i: (i, 0)),        # per-node graph id
                pl.BlockSpec((tm, f_pad), lambda i: (i, 0))]    # node features (pipelined)
    in_specs += wb_specs

    out_padded = pl.pallas_call(
        functools.partial(_fused_kernel, num_layers=num_layers,
                          num_graphs=num_graphs, num_classes=num_classes),
        out_shape=jax.ShapeDtypeStruct((b_pad, 2 * c_pad), jnp.float32),
        grid=grid,
        in_specs=in_specs,
        out_specs=pl.BlockSpec((b_pad, 2 * c_pad), lambda i: (0, 0)),
        scratch_shapes=[pltpu.VMEM((b_pad, c_pad), jnp.float32),   # running max pool
                        pltpu.VMEM((b_pad, c_pad), jnp.float32)],  # running sum pool (+counts)
        # node-tile axis is a reduction axis for the pool accumulators -> "arbitrary"
        compiler_params=pltpu.CompilerParams(
            dimension_semantics=("arbitrary",)),
        cost_estimate=pl.CostEstimate(flops=int(flops),
                                      transcendentals=int(transcendentals),
                                      bytes_accessed=int(bytes_accessed)),
    )(gid, x_p, *flat_wb)

    # slice away lane/row padding: output = log_softmax(cat([gmp, gap], dim=1))
    return jnp.concatenate(
        [out_padded[:num_graphs, :num_classes],
         out_padded[:num_graphs, c_pad:c_pad + num_classes]], axis=1)


# -------------------- pure-JAX reference (matches kernel numerics) --------------------

def _reference_forward(x, batch, num_graphs, params):
    h = x.astype(jnp.float32)
    for li, (w, b) in enumerate(params):
        if li == 0:
            h = jnp.dot(h, w, preferred_element_type=jnp.float32) + b
        else:
            h = jnp.dot(h.astype(jnp.bfloat16), w.astype(jnp.bfloat16),
                        preferred_element_type=jnp.float32) + b
        if li < len(params) - 1:
            h = h * jax.nn.sigmoid(h)
    onehot = (batch[None, :] == jnp.arange(num_graphs)[:, None]).astype(jnp.float32)
    cnt = jnp.maximum(onehot.sum(axis=1, keepdims=True), 1.0)
    gap = onehot @ h / cnt
    gmp = jnp.max(jnp.where(onehot[:, :, None] > 0, h[None, :, :], -jnp.inf), axis=1)
    z = jnp.concatenate([gmp, gap], axis=1)
    return jax.nn.log_softmax(z, axis=1)


if __name__ == "__main__":
    key = jax.random.PRNGKey(0)
    num_features, width, num_classes = 4, [32, 16], 4
    num_nodes, num_graphs = 16, 2

    kx, kp = jax.random.split(key)
    x = jax.random.normal(kx, (num_nodes, num_features), jnp.float32)
    batch = jnp.repeat(jnp.arange(num_graphs, dtype=jnp.int32),
                       num_nodes // num_graphs)
    # dummy ring graph (unused by K=1 ChebConv but kept for interface parity)
    edge_index = jnp.stack([jnp.arange(num_nodes, dtype=jnp.int32),
                            (jnp.arange(num_nodes, dtype=jnp.int32) + 1) % num_nodes])

    params = init_params(kp, num_features, width, num_classes)

    out = cheb_conv_net_forward(x, edge_index, batch, num_graphs, params)
    out = jax.block_until_ready(out)

    assert out.shape == (num_graphs, 2 * num_classes)
    assert bool(jnp.all(jnp.isfinite(out)))
    # log_softmax rows should sum to 1 in probability space
    assert bool(jnp.allclose(jnp.sum(jnp.exp(out), axis=1), 1.0, atol=1e-3))
    # match the pure-JAX reference (bf16-matched; exact mean-pool divide -> tight tol)
    ref = _reference_forward(x, batch, num_graphs, params)
    assert bool(jnp.allclose(out, ref, atol=1e-2, rtol=1e-2))
    print("KERNEL_OK")
</pallas_src>

<mosaic_0001>
module attributes {stable_mosaic.version = 11 : i64} {
  func.func @_fused_kernel(%arg0: i32, %arg1: memref<16x1xi32, #tpu.memory_space<vmem>>, %arg2: memref<16x8xf32, #tpu.memory_space<vmem>>, %arg3: memref<8x128xf32, #tpu.memory_space<vmem>>, %arg4: memref<1x128xf32, #tpu.memory_space<vmem>>, %arg5: memref<128x128xbf16, #tpu.memory_space<vmem>>, %arg6: memref<1x128xf32, #tpu.memory_space<vmem>>, %arg7: memref<128x128xbf16, #tpu.memory_space<vmem>>, %arg8: memref<1x128xf32, #tpu.memory_space<vmem>>, %arg9: memref<8x256xf32, #tpu.memory_space<vmem>>, %arg10: memref<8x128xf32, #tpu.memory_space<vmem>>, %arg11: memref<8x128xf32, #tpu.memory_space<vmem>>) attributes {dimension_semantics = [#tpu.dimension_semantics<arbitrary>], iteration_bounds = array<i64: 1>, scalar_prefetch = 0 : i64, scratch_operands = 2 : i64, tpu.core_type = #tpu.core_type<tc>, window_params = [{transform_indices = @transform_0, window_bounds = array<i64: 16, 1>}, {transform_indices = @transform_1, window_bounds = array<i64: 16, 8>}, {pipeline_mode = #tpu.pipeline_mode<synchronous>, transform_indices = @transform_2, window_bounds = array<i64: 8, 128>}, {pipeline_mode = #tpu.pipeline_mode<synchronous>, transform_indices = @transform_3, window_bounds = array<i64: 1, 128>}, {pipeline_mode = #tpu.pipeline_mode<synchronous>, transform_indices = @transform_4, window_bounds = array<i64: 128, 128>}, {pipeline_mode = #tpu.pipeline_mode<synchronous>, transform_indices = @transform_5, window_bounds = array<i64: 1, 128>}, {pipeline_mode = #tpu.pipeline_mode<synchronous>, transform_indices = @transform_6, window_bounds = array<i64: 128, 128>}, {pipeline_mode = #tpu.pipeline_mode<synchronous>, transform_indices = @transform_7, window_bounds = array<i64: 1, 128>}, {pipeline_mode = #tpu.pipeline_mode<synchronous>, transform_indices = @transform_8, window_bounds = array<i64: 8, 256>}]} {
    %c0_i32 = arith.constant 0 : i32
    %0 = arith.cmpi eq, %arg0, %c0_i32 : i32
    %1 = arith.extui %0 : i1 to i32
    %c0_i32_0 = arith.constant 0 : i32
    %2 = arith.cmpi ne, %1, %c0_i32_0 : i32
    scf.if %2 {
      %cst_40 = arith.constant -1.000000e+30 : f32
      %82 = vector.broadcast %cst_40 : f32 to vector<8x128xf32>
      %c0_41 = arith.constant 0 : index
      %c0_42 = arith.constant 0 : index
      %83 = vector.load %arg10[%c0_41, %c0_42] : memref<8x128xf32, #tpu.memory_space<vmem>>, vector<8x128xf32>
      tpu.vector_store %arg10[%c0_41, %c0_42], %82 {strides = array<i32>} : memref<8x128xf32, #tpu.memory_space<vmem>>, vector<8x128xf32>,
      %cst_43 = arith.constant 0.000000e+00 : f32
      %84 = vector.broadcast %cst_43 : f32 to vector<8x128xf32>
      %c0_44 = arith.constant 0 : index
      %c0_45 = arith.constant 0 : index
      %85 = vector.load %arg11[%c0_44, %c0_45] : memref<8x128xf32, #tpu.memory_space<vmem>>, vector<8x128xf32>
      tpu.vector_store %arg11[%c0_44, %c0_45], %84 {strides = array<i32>} : memref<8x128xf32, #tpu.memory_space<vmem>>, vector<8x128xf32>,
    } else {
    }
    %c0 = arith.constant 0 : index
    %c0_1 = arith.constant 0 : index
    %3 = vector.load %arg2[%c0, %c0_1] : memref<16x8xf32, #tpu.memory_space<vmem>>, vector<16x8xf32>
    %c0_2 = arith.constant 0 : index
    %c0_3 = arith.constant 0 : index
    %4 = vector.load %arg3[%c0_2, %c0_3] : memref<8x128xf32, #tpu.memory_space<vmem>>, vector<8x128xf32>
    %cst = arith.constant dense<0.000000e+00> : vector<16x128xf32>
    %5 = tpu.matmul %3, %4, %cst {dimension_numbers = #tpu.dot_dimension_numbers<[1], [0], [0], [1], [0, 0, 1, 1], [], []>} : vector<16x8xf32>, vector<8x128xf32>, vector<16x128xf32> -> vector<16x128xf32>
    %c0_4 = arith.constant 0 : index
    %c0_5 = arith.constant 0 : index
    %6 = vector.load %arg4[%c0_4, %c0_5] : memref<1x128xf32, #tpu.memory_space<vmem>>, vector<1x128xf32>
    %7 = vector.broadcast %6 : vector<1x128xf32> to vector<16x128xf32>
    %8 = arith.addf %5, %7 : vector<16x128xf32>
    %9 = arith.negf %8 : vector<16x128xf32>
    %10 = math.exp %9 : vector<16x128xf32>
    %cst_6 = arith.constant 1.000000e+00 : f32
    %11 = vector.broadcast %cst_6 : f32 to vector<16x128xf32>
    %12 = arith.addf %11, %10 : vector<16x128xf32>
    %13 = arith.divf %11, %12 : vector<16x128xf32>
    %14 = arith.mulf %8, %13 : vector<16x128xf32>
    %15 = arith.truncf %14 : vector<16x128xf32> to vector<16x128xbf16>
    %c0_7 = arith.constant 0 : index
    %c0_8 = arith.constant 0 : index
    %16 = vector.load %arg5[%c0_7, %c0_8] : memref<128x128xbf16, #tpu.memory_space<vmem>>, vector<128x128xbf16>
    %cst_9 = arith.constant dense<0.000000e+00> : vector<16x128xf32>
    %17 = tpu.matmul %15, %16, %cst_9 {dimension_numbers = #tpu.dot_dimension_numbers<[1], [0], [0], [1], [0, 0, 1, 1], [], []>} : vector<16x128xbf16>, vector<128x128xbf16>, vector<16x128xf32> -> vector<16x128xf32>
    %c0_10 = arith.constant 0 : index
    %c0_11 = arith.constant 0 : index
    %18 = vector.load %arg6[%c0_10, %c0_11] : memref<1x128xf32, #tpu.memory_space<vmem>>, vector<1x128xf32>
    %19 = vector.broadcast %18 : vector<1x128xf32> to vector<16x128xf32>
    %20 = arith.addf %17, %19 : vector<16x128xf32>
    %21 = arith.negf %20 : vector<16x128xf32>
    %22 = math.exp %21 : vector<16x128xf32>
    %cst_12 = arith.constant 1.000000e+00 : f32
    %23 = vector.broadcast %cst_12 : f32 to vector<16x128xf32>
    %24 = arith.addf %23, %22 : vector<16x128xf32>
    %25 = arith.divf %23, %24 : vector<16x128xf32>
    %26 = arith.mulf %20, %25 : vector<16x128xf32>
    %27 = arith.truncf %26 : vector<16x128xf32> to vector<16x128xbf16>
    %c0_13 = arith.constant 0 : index
    %c0_14 = arith.constant 0 : index
    %28 = vector.load %arg7[%c0_13, %c0_14] : memref<128x128xbf16, #tpu.memory_space<vmem>>, vector<128x128xbf16>
    %cst_15 = arith.constant dense<0.000000e+00> : vector<16x128xf32>
    %29 = tpu.matmul %27, %28, %cst_15 {dimension_numbers = #tpu.dot_dimension_numbers<[1], [0], [0], [1], [0, 0, 1, 1], [], []>} : vector<16x128xbf16>, vector<128x128xbf16>, vector<16x128xf32> -> vector<16x128xf32>
    %c0_16 = arith.constant 0 : index
    %c0_17 = arith.constant 0 : index
    %30 = vector.load %arg8[%c0_16, %c0_17] : memref<1x128xf32, #tpu.memory_space<vmem>>, vector<1x128xf32>
    %31 = vector.broadcast %30 : vector<1x128xf32> to vector<16x128xf32>
    %32 = arith.addf %29, %31 : vector<16x128xf32>
    %c0_18 = arith.constant 0 : index
    %c0_19 = arith.constant 0 : index
    %33 = vector.load %arg1[%c0_18, %c0_19] : memref<16x1xi32, #tpu.memory_space<vmem>>, vector<16x1xi32>
    %34 = tpu.iota {dimensions = array<i32: 1>} : vector<16x8xi32>
    %35 = vector.broadcast %33 : vector<16x1xi32> to vector<16x8xi32>
    %36 = arith.cmpi eq, %35, %34 : vector<16x8xi32>
    %37 = arith.extui %36 : vector<16x8xi1> to vector<16x8xi32>
    %38 = arith.sitofp %37 : vector<16x8xi32> to vector<16x8xf32>
    %39 = tpu.iota {dimensions = array<i32: 1>} : vector<16x128xi32>
    %c127_i32 = arith.constant 127 : i32
    %40 = vector.broadcast %c127_i32 : i32 to vector<16x128xi32>
    %41 = arith.cmpi eq, %39, %40 : vector<16x128xi32>
    %cst_20 = arith.constant 1.000000e+00 : f32
    %42 = vector.broadcast %cst_20 : f32 to vector<16x128xf32>
    %43 = arith.select %41, %42, %32 : vector<16x128xi1>, vector<16x128xf32>
    %cst_21 = arith.constant dense<0.000000e+00> : vector<8x128xf32>
    %44 = tpu.matmul %38, %43, %cst_21 {dimension_numbers = #tpu.dot_dimension_numbers<[0], [0], [1], [1], [0, 1, 1, 1], [], []>} : vector<16x8xf32>, vector<16x128xf32>, vector<8x128xf32> -> vector<8x128xf32>
    %c0_22 = arith.constant 0 : index
    %c0_23 = arith.constant 0 : index
    %45 = vector.load %arg11[%c0_22, %c0_23] : memref<8x128xf32, #tpu.memory_space<vmem>>, vector<8x128xf32>
    %46 = arith.addf %45, %44 : vector<8x128xf32>
    %c0_24 = arith.constant 0 : index
    %c0_25 = arith.constant 0 : index
    %47 = vector.load %arg11[%c0_24, %c0_25] : memref<8x128xf32, #tpu.memory_space<vmem>>, vector<8x128xf32>
    tpu.vector_store %arg11[%c0_24, %c0_25], %46 {strides = array<i32>} : memref<8x128xf32, #tpu.memory_space<vmem>>, vector<8x128xf32>,
    %48 = tpu.iota {dimensions = array<i32: 0>} : vector<8x128xi32>
    %cst_26 = arith.constant -1.000000e+30 : f32
    %49 = vector.broadcast %cst_26 : f32 to vector<8x128xf32>
    %c0_i32_27 = arith.constant 0 : i32
    %50 = vector.broadcast %c0_i32_27 : i32 to vector<16x1xi32>
    %51 = arith.cmpi eq, %33, %50 : vector<16x1xi32>
    %cst_28 = arith.constant -1.000000e+30 : f32
    %52 = vector.shape_cast %51 : vector<16x1xi1> to vector<16x1xi1>
    %53 = vector.broadcast %52 : vector<16x1xi1> to vector<16x128xi1>
    %54 = vector.broadcast %cst_28 : f32 to vector<16x128xf32>
    %55 = arith.select %53, %32, %54 : vector<16x128xi1>, vector<16x128xf32>
    %cst_29 = arith.constant dense<0xFF800000> : vector<128xf32>
    %56 = vector.multi_reduction <maximumf>, %55, %cst_29 [0] : vector<16x128xf32> to vector<128xf32>
    %57 = vector.shape_cast %56 : vector<128xf32> to vector<1x128xf32>
    %c0_i32_30 = arith.constant 0 : i32
    %58 = vector.broadcast %c0_i32_30 : i32 to vector<8x128xi32>
    %59 = arith.cmpi eq, %48, %58 : vector<8x128xi32>
    %60 = vector.shape_cast %57 : vector<1x128xf32> to vector<1x128xf32>
    %61 = vector.broadcast %60 : vector<1x128xf32> to vector<8x128xf32>
    %62 = arith.select %59, %61, %49 : vector<8x128xi1>, vector<8x128xf32>
    %c1_i32 = arith.constant 1 : i32
    %63 = vector.broadcast %c1_i32 : i32 to vector<16x1xi32>
    %64 = arith.cmpi eq, %33, %63 : vector<16x1xi32>
    %cst_31 = arith.constant -1.000000e+30 : f32
    %65 = vector.shape_cast %64 : vector<16x1xi1> to vector<16x1xi1>
    %66 = vector.broadcast %65 : vector<16x1xi1> to vector<16x128xi1>
    %67 = vector.broadcast %cst_31 : f32 to vector<16x128xf32>
    %68 = arith.select %66, %32, %67 : vector<16x128xi1>, vector<16x128xf32>
    %cst_32 = arith.constant dense<0xFF800000> : vector<128xf32>
    %69 = vector.multi_reduction <maximumf>, %68, %cst_32 [0] : vector<16x128xf32> to vector<128xf32>
    %70 = vector.shape_cast %69 : vector<128xf32> to vector<1x128xf32>
    %c1_i32_33 = arith.constant 1 : i32
    %71 = vector.broadcast %c1_i32_33 : i32 to vector<8x128xi32>
    %72 = arith.cmpi eq, %48, %71 : vector<8x128xi32>
    %73 = vector.shape_cast %70 : vector<1x128xf32> to vector<1x128xf32>
    %74 = vector.broadcast %73 : vector<1x128xf32> to vector<8x128xf32>
    %75 = arith.select %72, %74, %62 : vector<8x128xi1>, vector<8x128xf32>
    %c0_34 = arith.constant 0 : index
    %c0_35 = arith.constant 0 : index
    %76 = vector.load %arg10[%c0_34, %c0_35] : memref<8x128xf32, #tpu.memory_space<vmem>>, vector<8x128xf32>
    %77 = arith.maximumf %76, %75 : vector<8x128xf32>
    %c0_36 = arith.constant 0 : index
    %c0_37 = arith.constant 0 : index
    %78 = vector.load %arg10[%c0_36, %c0_37] : memref<8x128xf32, #tpu.memory_space<vmem>>, vector<8x128xf32>
    tpu.vector_store %arg10[%c0_36, %c0_37], %77 {strides = array<i32>} : memref<8x128xf32, #tpu.memory_space<vmem>>, vector<8x128xf32>,
    %c0_i32_38 = arith.constant 0 : i32
    %79 = arith.cmpi eq, %arg0, %c0_i32_38 : i32
    %80 = arith.extui %79 : i1 to i32
    %c0_i32_39 = arith.constant 0 : i32
    %81 = arith.cmpi ne, %80, %c0_i32_39 : i32
    scf.if %81 {
      %c0_40 = arith.constant 0 : index
      %c0_41 = arith.constant 0 : index
      %82 = vector.load %arg10[%c0_40, %c0_41] : memref<8x128xf32, #tpu.memory_space<vmem>>, vector<8x128xf32>
      %c0_42 = arith.constant 0 : index
      %c0_43 = arith.constant 0 : index
      %83 = vector.load %arg11[%c0_42, %c0_43] : memref<8x128xf32, #tpu.memory_space<vmem>>, vector<8x128xf32>
      %84 = vector.extract_strided_slice %83 {offsets = [0, 127], sizes = [8, 1], strides = [1, 1]} : vector<8x128xf32> to vector<8x1xf32>
      %cst_44 = arith.constant 1.000000e+00 : f32
      %85 = vector.broadcast %cst_44 : f32 to vector<8x1xf32>
      %86 = arith.maximumf %84, %85 : vector<8x1xf32>
      %87 = vector.broadcast %86 : vector<8x1xf32> to vector<8x128xf32>
      %88 = arith.divf %83, %87 : vector<8x128xf32>
      %89 = tpu.iota {dimensions = array<i32: 1>} : vector<8x128xi32>
      %c4_i32 = arith.constant 4 : i32
      %90 = vector.broadcast %c4_i32 : i32 to vector<8x128xi32>
      %91 = arith.cmpi slt, %89, %90 : vector<8x128xi32>
      %cst_45 = arith.constant -1.000000e+30 : f32
      %92 = vector.broadcast %cst_45 : f32 to vector<8x128xf32>
      %93 = arith.select %91, %82, %92 : vector<8x128xi1>, vector<8x128xf32>
      %cst_46 = arith.constant -1.000000e+30 : f32
      %94 = vector.broadcast %cst_46 : f32 to vector<8x128xf32>
      %95 = arith.select %91, %88, %94 : vector<8x128xi1>, vector<8x128xf32>
      %cst_47 = arith.constant dense<0xFF800000> : vector<8xf32>
      %96 = vector.multi_reduction <maximumf>, %93, %cst_47 [1] : vector<8x128xf32> to vector<8xf32>
      %97 = vector.shape_cast %96 : vector<8xf32> to vector<8x1xf32>
      %cst_48 = arith.constant dense<0xFF800000> : vector<8xf32>
      %98 = vector.multi_reduction <maximumf>, %95, %cst_48 [1] : vector<8x128xf32> to vector<8xf32>
      %99 = vector.shape_cast %98 : vector<8xf32> to vector<8x1xf32>
      %100 = arith.maximumf %97, %99 : vector<8x1xf32>
      %101 = vector.broadcast %100 : vector<8x1xf32> to vector<8x128xf32>
      %102 = arith.subf %93, %101 : vector<8x128xf32>
      %103 = math.exp %102 : vector<8x128xf32>
      %cst_49 = arith.constant dense<0.000000e+00> : vector<8xf32>
      %104 = vector.multi_reduction <add>, %103, %cst_49 [1] : vector<8x128xf32> to vector<8xf32>
      %105 = vector.shape_cast %104 : vector<8xf32> to vector<8x1xf32>
      %106 = vector.broadcast %100 : vector<8x1xf32> to vector<8x128xf32>
      %107 = arith.subf %95, %106 : vector<8x128xf32>
      %108 = math.exp %107 : vector<8x128xf32>
      %cst_50 = arith.constant dense<0.000000e+00> : vector<8xf32>
      %109 = vector.multi_reduction <add>, %108, %cst_50 [1] : vector<8x128xf32> to vector<8xf32>
      %110 = vector.shape_cast %109 : vector<8xf32> to vector<8x1xf32>
      %111 = arith.addf %105, %110 : vector<8x1xf32>
      %112 = math.log %111 : vector<8x1xf32>
      %113 = vector.broadcast %100 : vector<8x1xf32> to vector<8x128xf32>
      %114 = arith.subf %93, %113 : vector<8x128xf32>
      %115 = vector.broadcast %112 : vector<8x1xf32> to vector<8x128xf32>
      %116 = arith.subf %114, %115 : vector<8x128xf32>
      %c0_51 = arith.constant 0 : index
      %c0_52 = arith.constant 0 : index
      %117 = vector.load %arg9[%c0_51, %c0_52] : memref<8x256xf32, #tpu.memory_space<vmem>>, vector<8x128xf32>
      tpu.vector_store %arg9[%c0_51, %c0_52], %116 {strides = array<i32>} : memref<8x256xf32, #tpu.memory_space<vmem>>, vector<8x128xf32>,
      %118 = vector.broadcast %100 : vector<8x1xf32> to vector<8x128xf32>
      %119 = arith.subf %95, %118 : vector<8x128xf32>
      %120 = vector.broadcast %112 : vector<8x1xf32> to vector<8x128xf32>
      %121 = arith.subf %119, %120 : vector<8x128xf32>
      %c0_53 = arith.constant 0 : index
      %c128 = arith.constant 128 : index
      %122 = vector.load %arg9[%c0_53, %c128] : memref<8x256xf32, #tpu.memory_space<vmem>>, vector<8x128xf32>
      tpu.vector_store %arg9[%c0_53, %c128], %121 {strides = array<i32>} : memref<8x256xf32, #tpu.memory_space<vmem>>, vector<8x128xf32>,
    } else {
    }
    return
  }
  func.func @transform_0(%arg0: i32) -> (i32, i32) {
    %c0_i32 = arith.constant 0 : i32
    %c0_i32_0 = arith.constant 0 : i32
    return %arg0, %c0_i32 : i32, i32
  }
  func.func @transform_1(%arg0: i32) -> (i32, i32) {
    %c0_i32 = arith.constant 0 : i32
    %c0_i32_0 = arith.constant 0 : i32
    return %arg0, %c0_i32 : i32, i32
  }
  func.func @transform_2(%arg0: i32) -> (i32, i32) {
    %c0_i32 = arith.constant 0 : i32
    %c0_i32_0 = arith.constant 0 : i32
    %c0_i32_1 = arith.constant 0 : i32
    return %c0_i32, %c0_i32_0 : i32, i32
  }
  func.func @transform_3(%arg0: i32) -> (i32, i32) {
    %c0_i32 = arith.constant 0 : i32
    %c0_i32_0 = arith.constant 0 : i32
    %c0_i32_1 = arith.constant 0 : i32
    return %c0_i32, %c0_i32_0 : i32, i32
  }
  func.func @transform_4(%arg0: i32) -> (i32, i32) {
    %c0_i32 = arith.constant 0 : i32
    %c0_i32_0 = arith.constant 0 : i32
    %c0_i32_1 = arith.constant 0 : i32
    return %c0_i32, %c0_i32_0 : i32, i32
  }
  func.func @transform_5(%arg0: i32) -> (i32, i32) {
    %c0_i32 = arith.constant 0 : i32
    %c0_i32_0 = arith.constant 0 : i32
    %c0_i32_1 = arith.constant 0 : i32
    return %c0_i32, %c0_i32_0 : i32, i32
  }
  func.func @transform_6(%arg0: i32) -> (i32, i32) {
    %c0_i32 = arith.constant 0 : i32
    %c0_i32_0 = arith.constant 0 : i32
    %c0_i32_1 = arith.constant 0 : i32
    return %c0_i32, %c0_i32_0 : i32, i32
  }
  func.func @transform_7(%arg0: i32) -> (i32, i32) {
    %c0_i32 = arith.constant 0 : i32
    %c0_i32_0 = arith.constant 0 : i32
    %c0_i32_1 = arith.constant 0 : i32
    return %c0_i32, %c0_i32_0 : i32, i32
  }
  func.func @transform_8(%arg0: i32) -> (i32, i32) {
    %c0_i32 = arith.constant 0 : i32
    %c0_i32_0 = arith.constant 0 : i32
    %c0_i32_1 = arith.constant 0 : i32
    return %c0_i32, %c0_i32_0 : i32, i32
  }
}

</mosaic_0001>

<llo_original>
// kernel: tpu_custom_call.1
$region0: #{tpu_custom_call.1}
  #allocation0 [shape = 'u32[]', space=smem, size = 0x4, offset = 0x4, fixed_abs, tag = 'smem constant byte address 0x4 - core index']
  #allocation1 [shape = 'u32[72,128]{1,0:T(1,128)}', space=vmem, size = 0x9000, scoped, tag = 'internal scratch']
  #allocation2 [shape = 'f32[8,128]{1,0:T(8,128)}', space=vmem, size = 0x1000, scoped, tag = 'scratch operand']
  #allocation3 [shape = 'f32[8,128]{1,0:T(8,128)}', space=vmem, size = 0x1000, scoped, tag = 'scratch operand']
  %s0 = inlined_call_operand.vmem [shape: s32[16,1], index: 0, kind: input, shape index: {}]
  %s1 = inlined_call_operand.vmem [shape: f32[16,8], index: 1, kind: input, shape index: {}]
  %s2 = inlined_call_operand.vmem [shape: f32[8,128], index: 2, kind: input, shape index: {}]
  %s3 = inlined_call_operand.vmem [shape: f32[1,128], index: 3, kind: input, shape index: {}]
  %s4 = inlined_call_operand.hbm [shape: bf16[128,128], index: 4, kind: input, shape index: {}]
  %s5 = inlined_call_operand.vmem [shape: f32[1,128], index: 5, kind: input, shape index: {}]
  %s6 = inlined_call_operand.hbm [shape: bf16[128,128], index: 6, kind: input, shape index: {}]
  %s7 = inlined_call_operand.vmem [shape: f32[1,128], index: 7, kind: input, shape index: {}]
  %s8 = inlined_call_operand.hbm [shape: f32[8,256], index: 8, kind: output, shape index: {}]
  %s9 = sld [smem:[#allocation0]]
  $region58: #{tpu_custom_call.1} parent=0
    _
  %s11 = ssub.s32 1, %s9
  %s12 = scalar_select 0, %s11, %s9
  $region1: #{tpu_custom_call.1} parent=0
    #allocation4 [shape = 'u8[32768]{0}', space=vmem, size = 0x8000, scoped, tag = 'input window, operand 4, single buffered']
    #allocation5 [shape = 's32[1]{0}', space=sflag, size = 0x4, scoped, tag = 'scoped memory for tpu_custom_call.1']
    #allocation6 [shape = 's32[1]{0}', space=sflag, size = 0x4, scoped, tag = 'scoped memory for tpu_custom_call.1']
    #allocation7 [shape = 'u8[32768]{0}', space=vmem, size = 0x8000, scoped, tag = 'input window, operand 6, single buffered']
    #allocation8 [shape = 's32[1]{0}', space=sflag, size = 0x4, scoped, tag = 'scoped memory for tpu_custom_call.1']
    #allocation9 [shape = 'u8[8192]{0}', space=vmem, size = 0x2000, scoped, tag = 'output window, operand 0, single buffered']
    %13 = vsyncpa [#allocation5], 0
    %14 = vsyncpa [#allocation8], 0
    %15 = vsyncpa [#allocation6], 0
    // Predicated region
    $region2: #{tpu_custom_call.1} parent=1 // pred_check
      _
    $region3: #{tpu_custom_call.1} parent=1 // pred_check_branch
      %17 = sbr.rel (0) target = $region5
    $region4: #{tpu_custom_call.1} parent=1 // pred_region
      _
    $region5: #{tpu_custom_call.1} parent=1 // pred_fallthru
      _
    // Predicated region
    $region6: #{tpu_custom_call.1} parent=1 // pred_check
      _
    $region7: #{tpu_custom_call.1} parent=1 // pred_check_branch
      %19 = sbr.rel (0) target = $region9
    $region8: #{tpu_custom_call.1} parent=1 // pred_region
      _
    $region9: #{tpu_custom_call.1} parent=1 // pred_fallthru
      _
    // Predicated region
    $region10: #{tpu_custom_call.1} parent=1 // pred_check
      _
    $region11: #{tpu_custom_call.1} parent=1 // pred_check_branch
      %21 = sbr.rel (0) target = $region13
    $region12: #{tpu_custom_call.1} parent=1 // pred_region
      _
    $region13: #{tpu_custom_call.1} parent=1 // pred_fallthru
      _
    // Predicated region
    $region14: #{tpu_custom_call.1} parent=1 // pred_check
      _
    $region15: #{tpu_custom_call.1} parent=1 // pred_check_branch
      %23 = sbr.rel (0) target = $region17
    $region16: #{tpu_custom_call.1} parent=1 // pred_region
      _
    $region17: #{tpu_custom_call.1} parent=1 // pred_fallthru
      _
    // Predicated region
    $region18: #{tpu_custom_call.1} parent=1 // pred_check
      _
    $region19: #{tpu_custom_call.1} parent=1 // pred_check_branch
      %25 = sbr.rel (0) target = $region21
    $region20: #{tpu_custom_call.1} parent=1 // pred_region
      %27 = vsyncadd [#allocation5], 0
      %s28 = sshll.u32 %s4, 4
      %s29 = int_to_ptr.hbm [resolvable:$true] %s28
      %s30 = sshll.u32 [#allocation4], 4
      %s31 = int_to_ptr.vmem [resolvable:$true] %s30
      %36 = dma.hbm_to_vmem [thread:$0]  %s29, 1024, %s31, [#allocation5], 64, 64, 4
    $region21: #{tpu_custom_call.1} parent=1 // pred_fallthru
      _
    // Predicated region
    $region22: #{tpu_custom_call.1} parent=1 // pred_check
      _
    $region23: #{tpu_custom_call.1} parent=1 // pred_check_branch
      %38 = sbr.rel (0) target = $region25
    $region24: #{tpu_custom_call.1} parent=1 // pred_region
      _
    $region25: #{tpu_custom_call.1} parent=1 // pred_fallthru
      _
    // Predicated region
    $region26: #{tpu_custom_call.1} parent=1 // pred_check
      _
    $region27: #{tpu_custom_call.1} parent=1 // pred_check_branch
      %40 = sbr.rel (0) target = $region29
    $region28: #{tpu_custom_call.1} parent=1 // pred_region
      %42 = vsyncadd [#allocation8], 0
      %s43 = sshll.u32 %s6, 4
      %s44 = int_to_ptr.hbm [resolvable:$true] %s43
      %s45 = sshll.u32 [#allocation7], 4
      %s46 = int_to_ptr.vmem [resolvable:$true] %s45
      %51 = dma.hbm_to_vmem [thread:$0]  %s44, 1024, %s46, [#allocation8], 64, 64, 4
    $region29: #{tpu_custom_call.1} parent=1 // pred_fallthru
      _
    // Predicated region
    $region30: #{tpu_custom_call.1} parent=1 // pred_check
      _
    $region31: #{tpu_custom_call.1} parent=1 // pred_check_branch
      %53 = sbr.rel (0) target = $region33
    $region32: #{tpu_custom_call.1} parent=1 // pred_region
      _
    $region33: #{tpu_custom_call.1} parent=1 // pred_fallthru
      _
    // Predicated region
    $region34: #{tpu_custom_call.1} parent=1 // pred_check
      _
    $region35: #{tpu_custom_call.1} parent=1 // pred_check_branch
      %55 = sbr.rel (0) target = $region37
    $region36: #{tpu_custom_call.1} parent=1 // pred_region
      %57 = dma.done [#allocation5], 1024
    $region37: #{tpu_custom_call.1} parent=1 // pred_fallthru
      _
    // Predicated region
    $region38: #{tpu_custom_call.1} parent=1 // pred_check
      _
    $region39: #{tpu_custom_call.1} parent=1 // pred_check_branch
      %59 = sbr.rel (0) target = $region41
    $region40: #{tpu_custom_call.1} parent=1 // pred_region
      %61 = dma.done [#allocation8], 1024
    $region41: #{tpu_custom_call.1} parent=1 // pred_fallthru
      _
    %p62 = scmp.eq.s32.totalorder 0, 0
    // Predicated region
    $region42: #{tpu_custom_call.1} parent=1 // pred_check
      %p63 = pneg %p62
    $region43: #{tpu_custom_call.1} parent=1 // pred_check_branch
      %65 = sbr.rel (%p63) target = $region45
    $region44: #{tpu_custom_call.1} parent=1 // pred_region
      %66 = vst [vmem:[#allocation2] sm:$0xff] -1e+30
      %67 = vst [vmem:[#allocation3] sm:$0xff] 0.0
    $region45: #{tpu_custom_call.1} parent=1 // pred_fallthru
      _
    %v68 = vld [vmem:[%s1] sm:$0xff]
    %v69 = vld [vmem:[%s1 + $0x8] sm:$0xff]
    %v70 = vld [vmem:[%s2] sm:$0xff]
    %v71 = vld [vmem:[%s3] sm:$0x1]
    %v73 = vperm.slane %v71, 0
    %vm75 = vcmask 64512
    %v77 = vsel %vm75, %v68, 0
    %v80 = vsel %vm75, %v69, 0
    %82 = vmatpush.msra.mxu0 0.0
    %83 = vmatpush.msra.mxu0 0.0
    %84 = vmatpush.msra.mxu0 0.0
    %85 = vmatpush.msra.mxu0 0.0
    %86 = vmatpush.msra.mxu0 0.0
    %87 = vmatpush.msra.mxu0 0.0
    %88 = vmatpush.msra.mxu0 0.0
    %89 = vmatpush.msra.mxu0 0.0
    %90 = vmatpush.msra.mxu0 0.0
    %91 = vmatpush.msra.mxu0 0.0
    %92 = vmatpush.msra.mxu0 0.0
    %93 = vmatpush.msra.mxu0 0.0
    %94 = vmatpush.msra.mxu0 0.0
    %95 = vmatpush.msra.mxu0 0.0
    %96 = vmatpush.msra.mxu0 0.0
    %97 = vmatpush.msra.mxu0 %v70
    %98 = vmatmul.f32.gmra.mxu0 %v77
    %v99 = vpop.f32.mrf.mxu0
    %v100 = vadd.f32 %v73, %v99
    %101 = vmatmul.f32.gmra.mxu0 %v80
    %v102 = vpop.f32.mrf.mxu0
    %v103 = vadd.f32 %v73, %v102
    %104 = vdwg.mxu0
    %v105 = vxor.u32 %v100, 2147483648
    %v106 = vxor.u32 %v103, 2147483648
    %v107 = vmul.f32 %v105, 1.442695
    %v108 = vpow.pop %v107
    %v109 = vmul.f32 %v106, 1.442695
    %v110 = vpow.pop %v109
    %v111 = vadd.f32 %v108, 1.0
    %v112 = vadd.f32 %v110, 1.0
    %v113 = vrcp.pop %v111
    %v114 = vmul.f32 %v111, %v113
    %v115 = vsub.f32 1.0, %v114
    %v116 = vmul.f32 %v113, %v115
    %v117 = vadd.f32 %v113, %v116
    %vm118 = vweird.f32 %v111
    %vm119 = vweird.f32 %v113
    %vm120 = vmor %vm118, %vm119
    %v121 = vsel %vm120, %v113, %v117
    %v122 = vand.u32 2147483647, %v111
    %vm123 = vcmp.eq.f32.partialorder %v122, 8.507059e+37
    %v124 = vand.u32 %v111, 2147483648
    %v125 = vor.u32 1.1754944e-38, %v124
    %v126 = vsel %vm123, %v125, %v121
    %v127 = vmul.f32 1.0, %v126
    %v128 = vrcp.pop %v112
    %v129 = vmul.f32 %v112, %v128
    %v130 = vsub.f32 1.0, %v129
    %v131 = vmul.f32 %v128, %v130
    %v132 = vadd.f32 %v128, %v131
    %vm133 = vweird.f32 %v112
    %vm134 = vweird.f32 %v128
    %vm135 = vmor %vm133, %vm134
    %v136 = vsel %vm135, %v128, %v132
    %v137 = vand.u32 2147483647, %v112
    %vm138 = vcmp.eq.f32.partialorder %v137, 8.507059e+37
    %v139 = vand.u32 %v112, 2147483648
    %v140 = vor.u32 1.1754944e-38, %v139
    %v141 = vsel %vm138, %v140, %v136
    %v142 = vmul.f32 1.0, %v141
    %v143 = vmul.f32 %v100, %v127
    %v144 = vmul.f32 %v103, %v142
    %v145 = vpack.c.bf16 %v144, %v143
    %v146 = vld [vmem:[#allocation4] sm:$0xf]
    %v147 = vld [vmem:[#allocation4 + $0x4] sm:$0xf]
    %v148 = vld [vmem:[#allocation4 + $0x8] sm:$0xf]
    %v149 = vld [vmem:[#allocation4 + $0xc] sm:$0xf]
    %v150 = vld [vmem:[#allocation4 + $0x10] sm:$0xf]
    %v151 = vld [vmem:[#allocation4 + $0x14] sm:$0xf]
    %v152 = vld [vmem:[#allocation4 + $0x18] sm:$0xf]
    %v153 = vld [vmem:[#allocation4 + $0x1c] sm:$0xf]
    %v154 = vld [vmem:[#allocation4 + $0x20] sm:$0xf]
    %v155 = vld [vmem:[#allocation4 + $0x24] sm:$0xf]
    %v156 = vld [vmem:[#allocation4 + $0x28] sm:$0xf]
    %v157 = vld [vmem:[#allocation4 + $0x2c] sm:$0xf]
    %v158 = vld [vmem:[#allocation4 + $0x30] sm:$0xf]
    %v159 = vld [vmem:[#allocation4 + $0x34] sm:$0xf]
    %v160 = vld [vmem:[#allocation4 + $0x38] sm:$0xf]
    %v161 = vld [vmem:[#allocation4 + $0x3c] sm:$0xf]
    %v162 = vld [vmem:[%s5] sm:$0x1]
    %v164 = vperm.slane %v162, 0
    %v182 = vunpack.c.l.b16 %v146
    %v183 = vunpack.c.l.b16 %v147
    %v184 = vunpack.c.l.b16 %v148
    %v185 = vunpack.c.l.b16 %v149
    %v186 = vunpack.c.l.b16 %v150
    %v187 = vunpack.c.l.b16 %v151
    %v188 = vunpack.c.l.b16 %v152
    %v189 = vunpack.c.l.b16 %v153
    %v190 = vunpack.c.l.b16 %v154
    %v191 = vunpack.c.l.b16 %v155
    %v192 = vunpack.c.l.b16 %v156
    %v193 = vunpack.c.l.b16 %v157
    %v194 = vunpack.c.l.b16 %v158
    %v195 = vunpack.c.l.b16 %v159
    %v196 = vunpack.c.l.b16 %v160
    %v197 = vunpack.c.l.b16 %v161
    %v198 = vpack.c.b16 %v183, %v182
    %v199 = vpack.c.b16 %v185, %v184
    %v200 = vpack.c.b16 %v187, %v186
    %v201 = vpack.c.b16 %v189, %v188
    %v202 = vpack.c.b16 %v191, %v190
    %v203 = vpack.c.b16 %v193, %v192
    %v204 = vpack.c.b16 %v195, %v194
    %v205 = vpack.c.b16 %v197, %v196
    %214 = vmatpush.bf16.msra.mxu0 %v205
    %215 = vmatpush.bf16.msra.mxu0 %v204
    %216 = vmatpush.bf16.msra.mxu0 %v203
    %217 = vmatpush.bf16.msra.mxu0 %v202
    %218 = vmatpush.bf16.msra.mxu0 %v201
    %219 = vmatpush.bf16.msra.mxu0 %v200
    %220 = vmatpush.bf16.msra.mxu0 %v199
    %221 = vmatpush.bf16.msra.mxu0 %v198
    %222 = vmatmul.bf16.gmra.mxu0 %v145
    %v223 = vpop.f32.mrf.mxu0
    %v224 = vadd.f32 %v164, %v223
    %v225 = vpop.f32.mrf.mxu0
    %v226 = vadd.f32 %v164, %v225
    %227 = vdwg.mxu0
    %v228 = vxor.u32 %v224, 2147483648
    %v229 = vxor.u32 %v226, 2147483648
    %v230 = vmul.f32 %v228, 1.442695
    %v231 = vpow.pop %v230
    %v232 = vmul.f32 %v229, 1.442695
    %v233 = vpow.pop %v232
    %v234 = vadd.f32 %v231, 1.0
    %v235 = vadd.f32 %v233, 1.0
    %v236 = vrcp.pop %v234
    %v237 = vmul.f32 %v234, %v236
    %v238 = vsub.f32 1.0, %v237
    %v239 = vmul.f32 %v236, %v238
    %v240 = vadd.f32 %v236, %v239
    %vm241 = vweird.f32 %v234
    %vm242 = vweird.f32 %v236
    %vm243 = vmor %vm241, %vm242
    %v244 = vsel %vm243, %v236, %v240
    %v245 = vand.u32 2147483647, %v234
    %vm246 = vcmp.eq.f32.partialorder %v245, 8.507059e+37
    %v247 = vand.u32 %v234, 2147483648
    %v248 = vor.u32 1.1754944e-38, %v247
    %v249 = vsel %vm246, %v248, %v244
    %v250 = vmul.f32 1.0, %v249
    %v251 = vrcp.pop %v235
    %v252 = vmul.f32 %v235, %v251
    %v253 = vsub.f32 1.0, %v252
    %v254 = vmul.f32 %v251, %v253
    %v255 = vadd.f32 %v251, %v254
    %vm256 = vweird.f32 %v235
    %vm257 = vweird.f32 %v251
    %vm258 = vmor %vm256, %vm257
    %v259 = vsel %vm258, %v251, %v255
    %v260 = vand.u32 2147483647, %v235
    %vm261 = vcmp.eq.f32.partialorder %v260, 8.507059e+37
    %v262 = vand.u32 %v235, 2147483648
    %v263 = vor.u32 1.1754944e-38, %v262
    %v264 = vsel %vm261, %v263, %v259
    %v265 = vmul.f32 1.0, %v264
    %v266 = vmul.f32 %v224, %v250
    %v267 = vmul.f32 %v226, %v265
    %v268 = vpack.c.bf16 %v267, %v266
    %v269 = vld [vmem:[#allocation7] sm:$0xf]
    %v270 = vld [vmem:[#allocation7 + $0x4] sm:$0xf]
    %v271 = vld [vmem:[#allocation7 + $0x8] sm:$0xf]
    %v272 = vld [vmem:[#allocation7 + $0xc] sm:$0xf]
    %v273 = vld [vmem:[#allocation7 + $0x10] sm:$0xf]
    %v274 = vld [vmem:[#allocation7 + $0x14] sm:$0xf]
    %v275 = vld [vmem:[#allocation7 + $0x18] sm:$0xf]
    %v276 = vld [vmem:[#allocation7 + $0x1c] sm:$0xf]
    %v277 = vld [vmem:[#allocation7 + $0x20] sm:$0xf]
    %v278 = vld [vmem:[#allocation7 + $0x24] sm:$0xf]
    %v279 = vld [vmem:[#allocation7 + $0x28] sm:$0xf]
    %v280 = vld [vmem:[#allocation7 + $0x2c] sm:$0xf]
    %v281 = vld [vmem:[#allocation7 + $0x30] sm:$0xf]
    %v282 = vld [vmem:[#allocation7 + $0x34] sm:$0xf]
    %v283 = vld [vmem:[#allocation7 + $0x38] sm:$0xf]
    %v284 = vld [vmem:[#allocation7 + $0x3c] sm:$0xf]
    %v285 = vld [vmem:[%s7] sm:$0x1]
    %v287 = vperm.slane %v285, 0
    %v305 = vunpack.c.l.b16 %v269
    %v306 = vunpack.c.l.b16 %v270
    %v307 = vunpack.c.l.b16 %v271
    %v308 = vunpack.c.l.b16 %v272
    %v309 = vunpack.c.l.b16 %v273
    %v310 = vunpack.c.l.b16 %v274
    %v311 = vunpack.c.l.b16 %v275
    %v312 = vunpack.c.l.b16 %v276
    %v313 = vunpack.c.l.b16 %v277
    %v314 = vunpack.c.l.b16 %v278
    %v315 = vunpack.c.l.b16 %v279
    %v316 = vunpack.c.l.b16 %v280
    %v317 = vunpack.c.l.b16 %v281
    %v318 = vunpack.c.l.b16 %v282
    %v319 = vunpack.c.l.b16 %v283
    %v320 = vunpack.c.l.b16 %v284
    %v321 = vpack.c.b16 %v306, %v305
    %v322 = vpack.c.b16 %v308, %v307
    %v323 = vpack.c.b16 %v310, %v309
    %v324 = vpack.c.b16 %v312, %v311
    %v325 = vpack.c.b16 %v314, %v313
    %v326 = vpack.c.b16 %v316, %v315
    %v327 = vpack.c.b16 %v318, %v317
    %v328 = vpack.c.b16 %v320, %v319
    %337 = vmatpush.bf16.msra.mxu0 %v328
    %338 = vmatpush.bf16.msra.mxu0 %v327
    %339 = vmatpush.bf16.msra.mxu0 %v326
    %340 = vmatpush.bf16.msra.mxu0 %v325
    %341 = vmatpush.bf16.msra.mxu0 %v324
    %342 = vmatpush.bf16.msra.mxu0 %v323
    %343 = vmatpush.bf16.msra.mxu0 %v322
    %344 = vmatpush.bf16.msra.mxu0 %v321
    %345 = vmatmul.bf16.gmra.mxu0 %v268
    %v346 = vpop.f32.mrf.mxu0
    %v347 = vadd.f32 %v287, %v346
    %v348 = vpop.f32.mrf.mxu0
    %v349 = vadd.f32 %v287, %v348
    %350 = vdwg.mxu0
    %v351 = vld [vmem:[%s0] sm:$0xff]
    %v352 = vld [vmem:[%s0 + $0x8] sm:$0xff]
    %v353 = vlaneseq
    %v354 = vand.u32 %v353, 127
    %355 = vset.pattern.permute.xlu0 0
    %356 = vperm.xlu0 %355, %v351
    %v357 = vpop.permute.xlu0 %356
    %358 = vset.pattern.permute.xlu0 0
    %359 = vperm.xlu0 %358, %v352
    %v360 = vpop.permute.xlu0 %359
    %vm361 = vcmp.eq.s32.totalorder %v357, %v354
    %vm362 = vcmp.eq.s32.totalorder %v360, %v354
    %v363 = vsel %vm361, 1, 0
    %v364 = vsel %vm362, 1, 0
    %v365 = vcvt.s32.f32 %v363
    %v366 = vcvt.s32.f32 %v364
    %vm367 = vcmp.eq.s32.totalorder %v354, 127
    %v368 = vsel %vm367, 1.0, %v347
    %v369 = vsel %vm367, 1.0, %v349
    %370 = vxpose.xlu0.b32.start [1/16] %v365, 128
    %371 = vxpose.xlu0.b32.cont [2/16] %v366, 128
    %372 = vxpose.xlu0.b32.cont [3/16] 0.0, 128
    %373 = vxpose.xlu0.b32.cont [4/16] 0.0, 128
    %374 = vxpose.xlu0.b32.cont [5/16] 0.0, 128
    %375 = vxpose.xlu0.b32.cont [6/16] 0.0, 128
    %376 = vxpose.xlu0.b32.cont [7/16] 0.0, 128
    %377 = vxpose.xlu0.b32.cont [8/16] 0.0, 128
    %378 = vxpose.xlu0.b32.cont [9/16] 0.0, 128
    %379 = vxpose.xlu0.b32.cont [10/16] 0.0, 128
    %380 = vxpose.xlu0.b32.cont [11/16] 0.0, 128
    %381 = vxpose.xlu0.b32.cont [12/16] 0.0, 128
    %382 = vxpose.xlu0.b32.cont [13/16] 0.0, 128
    %383 = vxpose.xlu0.b32.cont [14/16] 0.0, 128
    %384 = vxpose.xlu0.b32.cont [15/16] 0.0, 128
    %385 = vxpose.xlu0.b32.end [16/16] 0.0, 128
    %v386 = vpop.trf.xlu0
    %v387 = vpop.trf.xlu0
    %v388 = vpop.trf.xlu0
    %v389 = vpop.trf.xlu0
    %v390 = vpop.trf.xlu0
    %v391 = vpop.trf.xlu0
    %v392 = vpop.trf.xlu0
    %v393 = vpop.trf.xlu0
    %v394 = vpop.trf.xlu0
    %v395 = vpop.trf.xlu0
    %v396 = vpop.trf.xlu0
    %v397 = vpop.trf.xlu0
    %v398 = vpop.trf.xlu0
    %v399 = vpop.trf.xlu0
    %v400 = vpop.trf.xlu0
    %v401 = vpop.trf.xlu0
    %vm402 = vcmask 130048
    %v404 = vsel %vm402, %v386, 0
    %406 = vmatpush.msra.mxu0 0.0
    %407 = vmatpush.msra.mxu0 0.0
    %408 = vmatpush.msra.mxu0 0.0
    %409 = vmatpush.msra.mxu0 0.0
    %410 = vmatpush.msra.mxu0 0.0
    %411 = vmatpush.msra.mxu0 0.0
    %412 = vmatpush.msra.mxu0 0.0
    %413 = vmatpush.msra.mxu0 0.0
    %414 = vmatpush.msra.mxu0 0.0
    %415 = vmatpush.msra.mxu0 0.0
    %416 = vmatpush.msra.mxu0 0.0
    %417 = vmatpush.msra.mxu0 0.0
    %418 = vmatpush.msra.mxu0 0.0
    %419 = vmatpush.msra.mxu0 0.0
    %420 = vmatpush.msra.mxu0 %v369
    %421 = vmatpush.msra.mxu0 %v368
    %422 = vmatmul.f32.gmra.mxu0 %v404
    %v423 = vpop.f32.mrf.mxu0
    %v424 = vadd.f32 0.0, %v423
    %425 = vdwg.mxu0
    %v426 = vld [vmem:[#allocation3] sm:$0xff]
    %v427 = vadd.f32 %v426, %v424
    %428 = vst [vmem:[#allocation3] sm:$0xff] %v427
    %v429 = vlaneseq
    %v430 = vshrl.u32 %v429, 7
    %vm431 = vcmp.eq.s32.totalorder %v351, 0
    %vm432 = vcmp.eq.s32.totalorder %v352, 0
    %v433 = vsel %vm431, 1, 0
    %v434 = vsel %vm432, 1, 0
    %435 = vset.pattern.permute.xlu0 0
    %436 = vperm.xlu0 %435, %v433
    %v437 = vpop.permute.xlu0 %436
    %438 = vset.pattern.permute.xlu0 0
    %439 = vperm.xlu0 %438, %v434
    %v440 = vpop.permute.xlu0 %439
    %vm441 = vcmp.eq.s32.totalorder %v437, 1
    %vm442 = vcmp.eq.s32.totalorder %v440, 1
    %v443 = vsel %vm441, %v347, -1e+30
    %v444 = vsel %vm442, %v349, -1e+30
    %v445 = vmax.f32 %v443, %v444
    %v446 = vrot.slane %v445, 4
    %v447 = vmax.f32 %v445, %v446
    %v448 = vrot.slane %v447, 2
    %v449 = vmax.f32 %v447, %v448
    %v450 = vrot.slane %v449, 1
    %v451 = vmax.f32 %v449, %v450
    %vm452 = vcmp.eq.s32.totalorder %v430, 0
    %v453 = vsel %vm452, %v451, -1e+30
    %vm454 = vcmp.eq.s32.totalorder %v351, 1
    %vm455 = vcmp.eq.s32.totalorder %v352, 1
    %v456 = vsel %vm454, 1, 0
    %v457 = vsel %vm455, 1, 0
    %458 = vset.pattern.permute.xlu0 0
    %459 = vperm.xlu0 %458, %v456
    %v460 = vpop.permute.xlu0 %459
    %461 = vset.pattern.permute.xlu0 0
    %462 = vperm.xlu0 %461, %v457
    %v463 = vpop.permute.xlu0 %462
    %vm464 = vcmp.eq.s32.totalorder %v460, 1
    %vm465 = vcmp.eq.s32.totalorder %v463, 1
    %v466 = vsel %vm464, %v347, -1e+30
    %v467 = vsel %vm465, %v349, -1e+30
    %v468 = vmax.f32 %v466, %v467
    %v469 = vrot.slane %v468, 4
    %v470 = vmax.f32 %v468, %v469
    %v471 = vrot.slane %v470, 2
    %v472 = vmax.f32 %v470, %v471
    %v473 = vrot.slane %v472, 1
    %v474 = vmax.f32 %v472, %v473
    %vm475 = vcmp.eq.s32.totalorder %v430, 1
    %v476 = vsel %vm475, %v474, %v453
    %v477 = vld [vmem:[#allocation2] sm:$0xff]
    %v478 = vmax.f32 %v477, %v476
    %479 = vst [vmem:[#allocation2] sm:$0xff] %v478
    // Predicated region
    $region46: #{tpu_custom_call.1} parent=1 // pred_check
      %p480 = pneg %p62
    $region47: #{tpu_custom_call.1} parent=1 // pred_check_branch
      %482 = sbr.rel (%p480) target = $region49
    $region48: #{tpu_custom_call.1} parent=1 // pred_region
      %v483 = vld [vmem:[#allocation2] sm:$0xff]
      %v484 = vld [vmem:[#allocation3] sm:$0xff]
      %v485 = vmax.f32 %v484, 1.0
      %487 = vset.pattern.permute.xlu0 127
      %488 = vperm.xlu0 %487, %v485
      %v489 = vpop.permute.xlu0 %488
      %v491 = vrcp.pop %v489
      %v492 = vmul.f32 %v489, %v491
      %v493 = vsub.f32 1.0, %v492
      %v494 = vmul.f32 %v491, %v493
      %v495 = vadd.f32 %v491, %v494
      %vm496 = vweird.f32 %v489
      %vm497 = vweird.f32 %v491
      %vm498 = vmor %vm496, %vm497
      %v499 = vsel %vm498, %v491, %v495
      %v500 = vand.u32 2147483647, %v489
      %vm501 = vcmp.eq.f32.partialorder %v500, 8.507059e+37
      %v502 = vand.u32 %v489, 2147483648
      %v503 = vor.u32 1.1754944e-38, %v502
      %v504 = vsel %vm501, %v503, %v499
      %v505 = vmul.f32 %v484, %v504
      %vm506 = vcmp.lt.s32.totalorder %v354, 4
      %v507 = vsel %vm506, %v483, -1e+30
      %v508 = vsel %vm506, %v505, -1e+30
      %509 = vmax.xlane.f32.xlu0 %v507
      %v510 = vpop.xlane.xlu0 %509
      %511 = vmax.xlane.f32.xlu0 %v508
      %v512 = vpop.xlane.xlu0 %511
      %v513 = vmax.f32 %v510, %v512
      %v514 = vsub.f32 %v507, %v513
      %v515 = vmul.f32 %v514, 1.442695
      %v516 = vpow.pop %v515
      %517 = vadd.xlane.f32.xlu0 %v516
      %v518 = vpop.xlane.xlu0 %517
      %v519 = vsub.f32 %v508, %v513
      %v520 = vmul.f32 %v519, 1.442695
      %v521 = vpow.pop %v520
      %522 = vadd.xlane.f32.xlu0 %v521
      %v523 = vpop.xlane.xlu0 %522
      %v524 = vadd.f32 %v518, %v523
      %v525 = vlog2.pop %v524
      %v526 = vmul.f32 %v525, 0.6931472
      %v527 = vsub.f32 %v514, %v526
      %528 = vst [vmem:[#allocation9] sm:$0xff] %v527
      %v529 = vsub.f32 %v519, %v526
      %530 = vst [vmem:[#allocation9 + $0x8] sm:$0xff] %v529
    $region49: #{tpu_custom_call.1} parent=1 // pred_fallthru
      _
    // Predicated region
    $region50: #{tpu_custom_call.1} parent=1 // pred_check
      _
    $region51: #{tpu_custom_call.1} parent=1 // pred_check_branch
      %532 = sbr.rel (0) target = $region53
    $region52: #{tpu_custom_call.1} parent=1 // pred_region
      %534 = vsyncadd [#allocation6], 0
      %s536 = sshll.u32 [#allocation9], 4
      %s537 = int_to_ptr.vmem [resolvable:$true] %s536
      %s538 = sshll.u32 %s8, 4
      %s539 = int_to_ptr.hbm [resolvable:$true] %s538
      %541 = dma.vmem_to_hbm [thread:$0]  %s537, 256, %s539, [#allocation6]
    $region53: #{tpu_custom_call.1} parent=1 // pred_fallthru
      _
    // Predicated region
    $region54: #{tpu_custom_call.1} parent=1 // pred_check
      _
    $region55: #{tpu_custom_call.1} parent=1 // pred_check_branch
      %543 = sbr.rel (0) target = $region57
    $region56: #{tpu_custom_call.1} parent=1 // pred_region
      %545 = dma.done [#allocation6], 256
    $region57: #{tpu_custom_call.1} parent=1 // pred_fallthru
      _
    %546 = vsyncpa [#allocation5], 1
    %547 = vsyncpa [#allocation8], 1
    %548 = vsyncpa [#allocation6], 1

</llo_original>
